<compile_context>
chip_gen: v6e
topology: v6e:2x2x1
jax: 0.10.0
libtpu: 0.0.40
codegen_flags: <defaults>
</compile_context>

<pallas_src>
import functools

import jax
import jax.numpy as jnp
from jax.experimental import pallas as pl
from jax.experimental.pallas import tpu as pltpu


def _linear_score_kernel(x_ref, w_ref, o_ref, *, fold):
    if fold > 1:
        # x_ref: (TM, fold*F) lane-folded feature block
        # w_ref: (fold*F, fold) block-diagonal selector, w_ref[j*F+f, j] = w[f]
        # o_ref: (TM, fold)    o[t, j] = score of original row fold*t + j
        # One MXU matmul performs the elementwise multiply AND the segmented
        # lane reduction; VPU/XLU stay idle and the step remains DMA-bound.
        o_ref[...] = jnp.dot(
            x_ref[...], w_ref[...], preferred_element_type=jnp.float32
        ).astype(o_ref.dtype)
    else:
        # Zero-copy fallback for shapes where lane-folding doesn't apply
        # (F doesn't divide 128, or B*S isn't a multiple of the fold factor).
        # x_ref: (TM, F), w_ref: (1, F) f32, o_ref: (TM, 1).
        x = x_ref[...].astype(jnp.float32)
        w = w_ref[...]                      # f32, broadcasts over sublanes
        o_ref[...] = jnp.sum(x * w, axis=-1, keepdims=True).astype(o_ref.dtype)


def linear_score_estimator(features, weight, bias=None, *, block_rows=8192):
    """LinearScoreEstimator.forward: features @ weight.T (+ bias) -> (B, S, 1).

    features: (B, S, F) float; weight: (1, F) = nn.Linear(F, 1).weight;
    bias: optional (1,) = nn.Linear(F, 1).bias (module default is bias=False).
    """
    B, S, F = features.shape
    M = B * S
    out_dtype = features.dtype

    # Fold the narrow feature axis into full 128-lane vregs when the row-major
    # reshape is a free view (F divides 128 and M divides by the fold factor).
    can_fold = (F <= 128) and (128 % F == 0) and (M % max(1, 128 // F) == 0)
    fold = (128 // F) if can_fold else 1
    Ff = F * fold
    Mf = M // fold

    xf = features.reshape(Mf, Ff)                 # free row-major view, no copy
    w_f32 = weight.reshape(F).astype(jnp.float32)  # keep full-precision weights
    if fold > 1:
        # Block-diagonal selector: wsel[j*F + f, j] = w[f]; lanes [j*F,(j+1)*F)
        # of folded row r belong to original row fold*r + j.
        eye = jnp.eye(fold, dtype=jnp.float32)
        wsel = (eye[:, None, :] * w_f32[None, :, None]).reshape(Ff, fold)
    else:
        wsel = w_f32.reshape(1, F)

    # Row tiling over folded rows.  Big tiles amortize the ~0.35us per-step
    # overhead; cap so large problems get >= 4 grid steps (2 per TensorCore on
    # v7x) but never drop below ~512 folded rows per step.
    tm_target = max(1, block_rows // fold)
    tm = min(tm_target, max(512, pl.cdiv(Mf, 4)))
    if tm >= Mf:
        tm = Mf                       # single block covering the full array
    else:
        tm = max(8, (tm // 8) * 8)    # sublane multiple; cdiv grid masks tail
    grid_m = pl.cdiv(Mf, tm)

    itemsize = jnp.dtype(features.dtype).itemsize
    cost = pl.CostEstimate(
        flops=2 * M * F,
        transcendentals=0,
        bytes_accessed=M * F * itemsize
        + M * jnp.dtype(out_dtype).itemsize
        + wsel.size * 4,
    )

    kernel = functools.partial(_linear_score_kernel, fold=fold)

    # TODO(synk): if profiling ever shows exposed DMA at step boundaries, add
    # pipeline_mode=pl.Buffered(3) to in_specs[0] (only worthwhile once
    # grid_m >= 4; plenty of VMEM headroom on all generations).
    out = pl.pallas_call(
        kernel,
        out_shape=jax.ShapeDtypeStruct((Mf, fold), out_dtype),
        grid_spec=pltpu.PrefetchScalarGridSpec(
            num_scalar_prefetch=0,
            grid=(grid_m,),
            in_specs=[
                pl.BlockSpec((tm, Ff), lambda i: (i, 0)),
                pl.BlockSpec(wsel.shape, lambda i: (0, 0)),
            ],
            out_specs=pl.BlockSpec((tm, fold), lambda i: (i, 0)),
        ),
        compiler_params=pltpu.CompilerParams(
            dimension_semantics=("parallel",),  # shard rows over both TCs on v7x
        ),
        cost_estimate=cost,
    )(xf, wsel)

    # out[r, j] is the score of original row r*fold + j; row-major reshape is
    # exactly the original row order (Mf * fold == M, no padding anywhere).
    scores = out.reshape(B, S, 1)
    if bias is not None:
        scores = scores + bias.reshape(()).astype(scores.dtype)
    return scores


if __name__ == "__main__":
    # Small shapes consistent with the module: batch=2, seq=8, num_features=32.
    B, S, F = 2, 8, 32

    key = jax.random.PRNGKey(0)
    k1, k2, k3 = jax.random.split(key, 3)
    features = jax.random.normal(k1, (B, S, F), dtype=jnp.float32)

    # Deterministic parameter init, matching the module's __init__:
    #   self.linear.weight.data[:] = 1 / num_features   (bias=False by default)
    weight = jnp.full((1, F), 1.0 / F, dtype=jnp.float32)

    # Tolerances allow for the MXU's default-precision f32 matmul passes while
    # still catching any indexing / segmentation bug (those give O(0.1) errors).
    ATOL = RTOL = 2e-3

    out = jax.block_until_ready(linear_score_estimator(features, weight))
    ref = jnp.sum(features * weight[0], axis=-1, keepdims=True)
    assert out.shape == (B, S, 1)
    assert jnp.allclose(out, ref, atol=ATOL, rtol=RTOL)

    # Ragged shape: B*S not a multiple of the fold factor -> zero-copy fold=1
    # fallback path (no jnp.pad / no input copy).
    B2, S2 = 3, 7
    features2 = jax.random.normal(k2, (B2, S2, F), dtype=jnp.float32)
    out2 = jax.block_until_ready(linear_score_estimator(features2, weight))
    ref2 = jnp.sum(features2 * weight[0], axis=-1, keepdims=True)
    assert out2.shape == (B2, S2, 1)
    assert jnp.allclose(out2, ref2, atol=ATOL, rtol=RTOL)

    # Larger (still tiny: ~2 MiB) shape exercising the multi-step grid,
    # tile cap (>= 4 steps) and the ragged cdiv tail on the folded path.
    B3, S3 = 4, 4096
    features3 = jax.random.normal(k3, (B3, S3, F), dtype=jnp.float32)
    out3 = jax.block_until_ready(linear_score_estimator(features3, weight))
    ref3 = jnp.sum(features3 * weight[0], axis=-1, keepdims=True)
    assert out3.shape == (B3, S3, 1)
    assert jnp.allclose(out3, ref3, atol=ATOL, rtol=RTOL)

    print("KERNEL_OK")
</pallas_src>

<mosaic_0001>
module attributes {stable_mosaic.version = 11 : i64} {
  func.func @_linear_score_kernel(%arg0: i32, %arg1: memref<4x128xf32, #tpu.memory_space<vmem>>, %arg2: memref<128x4xf32, #tpu.memory_space<vmem>>, %arg3: memref<4x4xf32, #tpu.memory_space<vmem>>) attributes {dimension_semantics = [#tpu.dimension_semantics<parallel>], iteration_bounds = array<i64: 1>, scalar_prefetch = 0 : i64, scratch_operands = 0 : i64, tpu.core_type = #tpu.core_type<tc>, window_params = [{transform_indices = @transform_0, window_bounds = array<i64: 4, 128>}, {pipeline_mode = #tpu.pipeline_mode<synchronous>, transform_indices = @transform_1, window_bounds = array<i64: 128, 4>}, {transform_indices = @transform_2, window_bounds = array<i64: 4, 4>}]} {
    %c0 = arith.constant 0 : index
    %c0_0 = arith.constant 0 : index
    %0 = vector.load %arg1[%c0, %c0_0] : memref<4x128xf32, #tpu.memory_space<vmem>>, vector<4x128xf32>
    %c0_1 = arith.constant 0 : index
    %c0_2 = arith.constant 0 : index
    %1 = vector.load %arg2[%c0_1, %c0_2] : memref<128x4xf32, #tpu.memory_space<vmem>>, vector<128x4xf32>
    %cst = arith.constant dense<0.000000e+00> : vector<4x4xf32>
    %2 = tpu.matmul %0, %1, %cst {dimension_numbers = #tpu.dot_dimension_numbers<[1], [0], [0], [1], [0, 0, 1, 1], [], []>} : vector<4x128xf32>, vector<128x4xf32>, vector<4x4xf32> -> vector<4x4xf32>
    %c0_3 = arith.constant 0 : index
    %c0_4 = arith.constant 0 : index
    %3 = vector.load %arg3[%c0_3, %c0_4] : memref<4x4xf32, #tpu.memory_space<vmem>>, vector<4x4xf32>
    tpu.vector_store %arg3[%c0_3, %c0_4], %2 {strides = array<i32>} : memref<4x4xf32, #tpu.memory_space<vmem>>, vector<4x4xf32>,
    return
  }
  func.func @transform_0(%arg0: i32) -> (i32, i32) {
    %c0_i32 = arith.constant 0 : i32
    %c0_i32_0 = arith.constant 0 : i32
    return %arg0, %c0_i32 : i32, i32
  }
  func.func @transform_1(%arg0: i32) -> (i32, i32) {
    %c0_i32 = arith.constant 0 : i32
    %c0_i32_0 = arith.constant 0 : i32
    %c0_i32_1 = arith.constant 0 : i32
    return %c0_i32, %c0_i32_0 : i32, i32
  }
  func.func @transform_2(%arg0: i32) -> (i32, i32) {
    %c0_i32 = arith.constant 0 : i32
    %c0_i32_0 = arith.constant 0 : i32
    return %arg0, %c0_i32 : i32, i32
  }
}

</mosaic_0001>

<llo_original>
// kernel: tpu_custom_call.1
$region0: #{tpu_custom_call.1}
  #allocation0 [shape = 'u32[]', space=smem, size = 0x4, offset = 0x4, fixed_abs, tag = 'smem constant byte address 0x4 - core index']
  #allocation1 [shape = 'u32[144,128]{1,0:T(1,128)}', space=vmem, size = 0x12000, scoped, tag = 'internal scratch']
  %s0 = inlined_call_operand.vmem [shape: f32[4,128], index: 0, kind: input, shape index: {}]
  %s1 = inlined_call_operand.vmem [shape: f32[128,4], index: 1, kind: input, shape index: {}]
  %s2 = inlined_call_operand.hbm [shape: f32[4,4], index: 2, kind: output, shape index: {}]
  %s3 = sld [smem:[#allocation0]]
  $region18: #{tpu_custom_call.1} parent=0
    _
  %s5 = ssub.s32 1, %s3
  %s6 = scalar_select 0, %s5, %s3
  $region1: #{tpu_custom_call.1} parent=0
    #allocation2 [shape = 'u8[2048]{0}', space=vmem, size = 0x800, scoped, tag = 'output window, operand 0, single buffered']
    #allocation3 [shape = 's32[1]{0}', space=sflag, size = 0x4, scoped, tag = 'scoped memory for tpu_custom_call.1']
    %7 = vsyncpa [#allocation3], 0
    // Predicated region
    $region2: #{tpu_custom_call.1} parent=1 // pred_check
      _
    $region3: #{tpu_custom_call.1} parent=1 // pred_check_branch
      %9 = sbr.rel (0) target = $region5
    $region4: #{tpu_custom_call.1} parent=1 // pred_region
      _
    $region5: #{tpu_custom_call.1} parent=1 // pred_fallthru
      _
    // Predicated region
    $region6: #{tpu_custom_call.1} parent=1 // pred_check
      _
    $region7: #{tpu_custom_call.1} parent=1 // pred_check_branch
      %11 = sbr.rel (0) target = $region9
    $region8: #{tpu_custom_call.1} parent=1 // pred_region
      _
    $region9: #{tpu_custom_call.1} parent=1 // pred_fallthru
      _
    %v12 = vld [vmem:[%s0] sm:$0xf]
    %v13 = vld [vmem:[%s1] sm:$0xff]
    %v14 = vld [vmem:[%s1 + $0x8] sm:$0xff]
    %v15 = vld [vmem:[%s1 + $0x10] sm:$0xff]
    %v16 = vld [vmem:[%s1 + $0x18] sm:$0xff]
    %v17 = vld [vmem:[%s1 + $0x20] sm:$0xff]
    %v18 = vld [vmem:[%s1 + $0x28] sm:$0xff]
    %v19 = vld [vmem:[%s1 + $0x30] sm:$0xff]
    %v20 = vld [vmem:[%s1 + $0x38] sm:$0xff]
    %v21 = vld [vmem:[%s1 + $0x40] sm:$0xff]
    %v22 = vld [vmem:[%s1 + $0x48] sm:$0xff]
    %v23 = vld [vmem:[%s1 + $0x50] sm:$0xff]
    %v24 = vld [vmem:[%s1 + $0x58] sm:$0xff]
    %v25 = vld [vmem:[%s1 + $0x60] sm:$0xff]
    %v26 = vld [vmem:[%s1 + $0x68] sm:$0xff]
    %v27 = vld [vmem:[%s1 + $0x70] sm:$0xff]
    %v28 = vld [vmem:[%s1 + $0x78] sm:$0xff]
    %29 = vmatprep.subr.mxu0 0.0
    %30 = vmatpush1.msra.mxu0 %v28
    %31 = vmatprep.subr.mxu0 0.0
    %32 = vmatpush1.msra.mxu0 %v27
    %33 = vmatprep.subr.mxu0 0.0
    %34 = vmatpush1.msra.mxu0 %v26
    %35 = vmatprep.subr.mxu0 0.0
    %36 = vmatpush1.msra.mxu0 %v25
    %37 = vmatprep.subr.mxu0 0.0
    %38 = vmatpush1.msra.mxu0 %v24
    %39 = vmatprep.subr.mxu0 0.0
    %40 = vmatpush1.msra.mxu0 %v23
    %41 = vmatprep.subr.mxu0 0.0
    %42 = vmatpush1.msra.mxu0 %v22
    %43 = vmatprep.subr.mxu0 0.0
    %44 = vmatpush1.msra.mxu0 %v21
    %45 = vmatprep.subr.mxu0 0.0
    %46 = vmatpush1.msra.mxu0 %v20
    %47 = vmatprep.subr.mxu0 0.0
    %48 = vmatpush1.msra.mxu0 %v19
    %49 = vmatprep.subr.mxu0 0.0
    %50 = vmatpush1.msra.mxu0 %v18
    %51 = vmatprep.subr.mxu0 0.0
    %52 = vmatpush1.msra.mxu0 %v17
    %53 = vmatprep.subr.mxu0 0.0
    %54 = vmatpush1.msra.mxu0 %v16
    %55 = vmatprep.subr.mxu0 0.0
    %56 = vmatpush1.msra.mxu0 %v15
    %57 = vmatprep.subr.mxu0 0.0
    %58 = vmatpush1.msra.mxu0 %v14
    %59 = vmatprep.subr.mxu0 0.0
    %60 = vmatpush1.msra.mxu0 %v13
    %61 = vmatprep.subr.mxu0 0.0
    %62 = vmatpush2.msra.mxu0 0.0
    %63 = vmatprep.subr.mxu0 0.0
    %64 = vmatpush2.msra.mxu0 0.0
    %65 = vmatprep.subr.mxu0 0.0
    %66 = vmatpush2.msra.mxu0 0.0
    %67 = vmatprep.subr.mxu0 0.0
    %68 = vmatpush2.msra.mxu0 0.0
    %69 = vmatprep.subr.mxu0 0.0
    %70 = vmatpush2.msra.mxu0 0.0
    %71 = vmatprep.subr.mxu0 0.0
    %72 = vmatpush2.msra.mxu0 0.0
    %73 = vmatprep.subr.mxu0 0.0
    %74 = vmatpush2.msra.mxu0 0.0
    %75 = vmatprep.subr.mxu0 0.0
    %76 = vmatpush2.msra.mxu0 0.0
    %77 = vmatprep.subr.mxu0 0.0
    %78 = vmatpush2.msra.mxu0 0.0
    %79 = vmatprep.subr.mxu0 0.0
    %80 = vmatpush2.msra.mxu0 0.0
    %81 = vmatprep.subr.mxu0 0.0
    %82 = vmatpush2.msra.mxu0 0.0
    %83 = vmatprep.subr.mxu0 0.0
    %84 = vmatpush2.msra.mxu0 0.0
    %85 = vmatprep.subr.mxu0 0.0
    %86 = vmatpush2.msra.mxu0 0.0
    %87 = vmatprep.subr.mxu0 0.0
    %88 = vmatpush2.msra.mxu0 0.0
    %89 = vmatprep.subr.mxu0 0.0
    %90 = vmatpush2.msra.mxu0 0.0
    %91 = vmatprep.subr.mxu0 0.0
    %92 = vmatpush2.msra.mxu0 0.0
    %93 = vmatprep.mubr.f32.mxu0 0.0
    %94 = vmatmul.mubr.f32.gmra.mxu0 %v12
    %v95 = vpop.f32.mrf.mxu0
    %v96 = vadd.f32 0.0, %v95
    %v97 = vpop.f32.mrf.mxu0
    %98 = vdwg.mxu0
    %vm99 = vcmask 27648
    %100 = vst.msk [vmem:[#allocation2] sm:$0xf] %vm99, %v96
    // Predicated region
    $region10: #{tpu_custom_call.1} parent=1 // pred_check
      _
    $region11: #{tpu_custom_call.1} parent=1 // pred_check_branch
      %102 = sbr.rel (0) target = $region13
    $region12: #{tpu_custom_call.1} parent=1 // pred_region
      %s104 = ssub.s32 64, 64
      %105 = vsyncadd [#allocation3], %s104
      %s107 = sshll.u32 [#allocation2], 4
      %s108 = int_to_ptr.vmem [resolvable:$true] %s107
      %110 = dma.vmem_to_hbm [thread:$0]  %s108, 64, %s2, [#allocation3]
    $region13: #{tpu_custom_call.1} parent=1 // pred_fallthru
      _
    // Predicated region
    $region14: #{tpu_custom_call.1} parent=1 // pred_check
      _
    $region15: #{tpu_custom_call.1} parent=1 // pred_check_branch
      %112 = sbr.rel (0) target = $region17
    $region16: #{tpu_custom_call.1} parent=1 // pred_region
      %113 = dma.done [#allocation3], 64
    $region17: #{tpu_custom_call.1} parent=1 // pred_fallthru
      _
    %114 = vsyncpa [#allocation3], 1

</llo_original>
